<compile_context>
chip_gen: v7x
topology: tpu7x:2x2x1
jax: 0.10.0
libtpu: 0.0.40
codegen_flags: <defaults>
</compile_context>

<pallas_src>
import functools

import jax
import jax.numpy as jnp
from jax.experimental import pallas as pl
from jax.experimental.pallas import tpu as pltpu

LANE = 128
_EPS = 1e-6


# ---------------------------------------------------------------------------
# Kernel: per-batch-row soft-IoU cost (1 - IoU)
# ---------------------------------------------------------------------------
def _softiou_kernel(pred_ref, tgt_ref, cost_ref, acc_ref, *,
                    n_valid, rb, needs_mask):
    r = pl.program_id(1)

    @pl.when(r == 0)
    def _init():
        acc_ref[0] = 0.0   # num accumulator
        acc_ref[1] = 0.0   # den accumulator

    o = pred_ref[...].astype(jnp.float32)   # (1, rb, 128) — upcast in-register
    t = tgt_ref[...].astype(jnp.float32)
    s = jax.nn.sigmoid(o)
    st = s * t
    num_c = st
    den_c = s + t - st

    if needs_mask:
        # Zero out contributions from the zero-padding appended past the true
        # N elements of this batch row (sigmoid(0)=0.5 would pollute `den`).
        row = jax.lax.broadcasted_iota(jnp.int32, o.shape, 1)
        lane = jax.lax.broadcasted_iota(jnp.int32, o.shape, 2)
        elem = r * (rb * LANE) + row * LANE + lane
        valid = elem < n_valid
        num_c = jnp.where(valid, num_c, 0.0)
        den_c = jnp.where(valid, den_c, 0.0)

    acc_ref[0] += jnp.sum(num_c)
    acc_ref[1] += jnp.sum(den_c)

    @pl.when(r == pl.num_programs(1) - 1)
    def _finalize():
        cost = 1.0 - acc_ref[0] / (acc_ref[1] + _EPS)
        cost_ref[...] = jnp.broadcast_to(cost, cost_ref.shape).astype(jnp.float32)


# ---------------------------------------------------------------------------
# Wrappers
# ---------------------------------------------------------------------------
def soft_iou_costs(y_pred, y_true, *, rb_max=2048):
    """Per-batch-row soft-IoU cost (1 - IoU). Returns float32 of shape (B,)."""
    B, N = y_pred.shape
    assert y_true.shape == (B, N)

    r_needed = pl.cdiv(N, LANE)                       # 128-lane rows needed
    r8 = ((r_needed + 7) // 8) * 8                    # sublane dim multiple of 8
    rb = max(8, (min(rb_max, r8) // 8) * 8)           # rows per block
    r_pad = pl.cdiv(r8, rb) * rb                      # whole number of blocks
    n_pad = r_pad * LANE
    needs_mask = n_pad != N

    def as_tiles(x):
        if n_pad != N:
            x = jnp.pad(x, ((0, 0), (0, n_pad - N)))  # only when unaligned
        return x.reshape(B, r_pad, LANE)              # free row-major reshape

    pred3 = as_tiles(y_pred)
    tgt3 = as_tiles(y_true)

    kernel = functools.partial(
        _softiou_kernel, n_valid=N, rb=rb, needs_mask=needs_mask)

    out = pl.pallas_call(
        kernel,
        out_shape=jax.ShapeDtypeStruct((B, 8, LANE), jnp.float32),
        grid_spec=pltpu.PrefetchScalarGridSpec(
            num_scalar_prefetch=0,
            grid=(B, r_pad // rb),
            in_specs=[
                pl.BlockSpec((1, rb, LANE), lambda b, r: (b, r, 0)),  # y_pred
                pl.BlockSpec((1, rb, LANE), lambda b, r: (b, r, 0)),  # y_true
            ],
            out_specs=pl.BlockSpec((1, 8, LANE), lambda b, r: (b, 0, 0)),
            scratch_shapes=[pltpu.SMEM((2,), jnp.float32)],
        ),
        compiler_params=pltpu.CompilerParams(
            dimension_semantics=("parallel", "arbitrary"),
        ),
    )(pred3, tgt3)

    return out[:, 0, 0]


def soft_iou_loss(y_pred, y_true, sw, *, rb_max=2048):
    """softIoULoss.forward: mean of soft-IoU costs over rows selected by sw."""
    costs = soft_iou_costs(y_pred, y_true, rb_max=rb_max)          # (B,)
    # torch.mean(torch.masked_select(costs, sw.byte())) == masked mean.
    # Implemented without data-dependent shapes so the whole forward is jittable.
    mask = (sw.reshape(-1) != 0).astype(jnp.float32)
    return jnp.sum(costs * mask) / jnp.sum(mask)
    # TODO(synk): the debug print()s in the PyTorch forward are intentionally omitted.


# ---------------------------------------------------------------------------
# Pure-JAX reference for verification
# ---------------------------------------------------------------------------
def _reference(y_pred, y_true, sw, e=1e-6):
    s = jax.nn.sigmoid(y_pred.astype(jnp.float32))
    t = y_true.astype(jnp.float32)
    num = jnp.sum(s * t, axis=1)
    den = jnp.sum(s + t - s * t, axis=1) + e
    costs = 1.0 - num / den
    mask = (sw.reshape(-1) != 0).astype(jnp.float32)
    return jnp.sum(costs * mask) / jnp.sum(mask)


if __name__ == "__main__":
    key = jax.random.PRNGKey(0)
    k1, k2 = jax.random.split(key, 2)

    # Small (batch, N) binary-mask problem; N=3000 is NOT a multiple of
    # 128*8, so the in-kernel padding mask path is exercised.
    B, N = 4, 3000
    y_pred = jax.random.normal(k1, (B, N), dtype=jnp.float32)              # logits
    y_true = (jax.random.uniform(k2, (B, N)) > 0.5).astype(jnp.float32)    # binary target
    sw = jnp.array([1, 0, 1, 1], dtype=jnp.int32)                          # per-row weights

    # rb_max=8 at this toy size forces grid_r > 1 so the init / accumulate /
    # finalize phases of the reduction all run (production default is 2048).
    loss_fn = jax.jit(soft_iou_loss, static_argnames=("rb_max",))
    loss = jax.block_until_ready(loss_fn(y_pred, y_true, sw, rb_max=8))

    ref = _reference(y_pred, y_true, sw)
    assert loss.shape == ref.shape == (), (loss.shape, ref.shape)
    assert jnp.allclose(loss, ref, rtol=1e-5, atol=1e-6), (float(loss), float(ref))

    print("KERNEL_OK")
</pallas_src>

<mosaic_0001>
module attributes {stable_mosaic.version = 11 : i64} {
  func.func @_softiou_kernel(%arg0: i32, %arg1: i32, %arg2: memref<1x8x128xf32, #tpu.memory_space<vmem>>, %arg3: memref<1x8x128xf32, #tpu.memory_space<vmem>>, %arg4: memref<1x8x128xf32, #tpu.memory_space<vmem>>, %arg5: memref<2xf32, #tpu.memory_space<smem>>) attributes {dimension_semantics = [#tpu.dimension_semantics<parallel>, #tpu.dimension_semantics<arbitrary>], iteration_bounds = array<i64: 4, 3>, scalar_prefetch = 0 : i64, scratch_operands = 1 : i64, tpu.core_type = #tpu.core_type<tc>, window_params = [{transform_indices = @transform_0, window_bounds = array<i64: 1, 8, 128>}, {transform_indices = @transform_1, window_bounds = array<i64: 1, 8, 128>}, {transform_indices = @transform_2, window_bounds = array<i64: 1, 8, 128>}]} {
    %c0_i32 = arith.constant 0 : i32
    %0 = arith.cmpi eq, %arg1, %c0_i32 : i32
    %1 = arith.extui %0 : i1 to i32
    %c0_i32_0 = arith.constant 0 : i32
    %2 = arith.cmpi ne, %1, %c0_i32_0 : i32
    scf.if %2 {
      %cst_14 = arith.constant 0.000000e+00 : f32
      %c0_15 = arith.constant 0 : index
      %44 = memref.load %arg5[%c0_15] : memref<2xf32, #tpu.memory_space<smem>>
      memref.store %cst_14, %arg5[%c0_15] : memref<2xf32, #tpu.memory_space<smem>>
      %cst_16 = arith.constant 0.000000e+00 : f32
      %c1_17 = arith.constant 1 : index
      %45 = memref.load %arg5[%c1_17] : memref<2xf32, #tpu.memory_space<smem>>
      memref.store %cst_16, %arg5[%c1_17] : memref<2xf32, #tpu.memory_space<smem>>
    } else {
    }
    %c0 = arith.constant 0 : index
    %c0_1 = arith.constant 0 : index
    %c0_2 = arith.constant 0 : index
    %3 = vector.load %arg2[%c0, %c0_1, %c0_2] : memref<1x8x128xf32, #tpu.memory_space<vmem>>, vector<1x8x128xf32>
    %c0_3 = arith.constant 0 : index
    %c0_4 = arith.constant 0 : index
    %c0_5 = arith.constant 0 : index
    %4 = vector.load %arg3[%c0_3, %c0_4, %c0_5] : memref<1x8x128xf32, #tpu.memory_space<vmem>>, vector<1x8x128xf32>
    %5 = arith.negf %3 : vector<1x8x128xf32>
    %6 = math.exp %5 : vector<1x8x128xf32>
    %cst = arith.constant 1.000000e+00 : f32
    %7 = vector.broadcast %cst : f32 to vector<1x8x128xf32>
    %8 = arith.addf %7, %6 : vector<1x8x128xf32>
    %9 = arith.divf %7, %8 : vector<1x8x128xf32>
    %10 = arith.mulf %9, %4 : vector<1x8x128xf32>
    %11 = arith.addf %9, %4 : vector<1x8x128xf32>
    %12 = arith.subf %11, %10 : vector<1x8x128xf32>
    %13 = tpu.iota {dimensions = array<i32: 1>} : vector<1x8x128xi32>
    %14 = tpu.iota {dimensions = array<i32: 2>} : vector<1x8x128xi32>
    %c1024_i32 = arith.constant 1024 : i32
    %15 = arith.muli %arg1, %c1024_i32 : i32
    %c128_i32 = arith.constant 128 : i32
    %16 = vector.broadcast %c128_i32 : i32 to vector<1x8x128xi32>
    %17 = arith.muli %13, %16 : vector<1x8x128xi32>
    %18 = vector.broadcast %15 : i32 to vector<1x8x128xi32>
    %19 = arith.addi %18, %17 : vector<1x8x128xi32>
    %20 = arith.addi %19, %14 : vector<1x8x128xi32>
    %c3000_i32 = arith.constant 3000 : i32
    %21 = vector.broadcast %c3000_i32 : i32 to vector<1x8x128xi32>
    %22 = arith.cmpi slt, %20, %21 : vector<1x8x128xi32>
    %cst_6 = arith.constant 0.000000e+00 : f32
    %23 = vector.broadcast %cst_6 : f32 to vector<1x8x128xf32>
    %24 = arith.select %22, %10, %23 : vector<1x8x128xi1>, vector<1x8x128xf32>
    %cst_7 = arith.constant 0.000000e+00 : f32
    %25 = vector.broadcast %cst_7 : f32 to vector<1x8x128xf32>
    %26 = arith.select %22, %12, %25 : vector<1x8x128xi1>, vector<1x8x128xf32>
    %c0_8 = arith.constant 0 : index
    %27 = memref.load %arg5[%c0_8] : memref<2xf32, #tpu.memory_space<smem>>
    %28 = vector.shape_cast %24 : vector<1x8x128xf32> to vector<1x1x8x128xf32>
    %cst_9 = arith.constant dense<0.000000e+00> : vector<1xf32>
    %29 = vector.multi_reduction <add>, %28, %cst_9 [1, 2, 3] : vector<1x1x8x128xf32> to vector<1xf32>
    %30 = vector.shape_cast %29 : vector<1xf32> to vector<1x1x1x1xf32>
    %31 = vector.extract %30[0, 0, 0, 0] : f32 from vector<1x1x1x1xf32>
    %32 = arith.addf %27, %31 : f32
    %c0_10 = arith.constant 0 : index
    %33 = memref.load %arg5[%c0_10] : memref<2xf32, #tpu.memory_space<smem>>
    memref.store %32, %arg5[%c0_10] : memref<2xf32, #tpu.memory_space<smem>>
    %c1 = arith.constant 1 : index
    %34 = memref.load %arg5[%c1] : memref<2xf32, #tpu.memory_space<smem>>
    %35 = vector.shape_cast %26 : vector<1x8x128xf32> to vector<1x1x8x128xf32>
    %cst_11 = arith.constant dense<0.000000e+00> : vector<1xf32>
    %36 = vector.multi_reduction <add>, %35, %cst_11 [1, 2, 3] : vector<1x1x8x128xf32> to vector<1xf32>
    %37 = vector.shape_cast %36 : vector<1xf32> to vector<1x1x1x1xf32>
    %38 = vector.extract %37[0, 0, 0, 0] : f32 from vector<1x1x1x1xf32>
    %39 = arith.addf %34, %38 : f32
    %c1_12 = arith.constant 1 : index
    %40 = memref.load %arg5[%c1_12] : memref<2xf32, #tpu.memory_space<smem>>
    memref.store %39, %arg5[%c1_12] : memref<2xf32, #tpu.memory_space<smem>>
    %c2_i32 = arith.constant 2 : i32
    %41 = arith.cmpi eq, %arg1, %c2_i32 : i32
    %42 = arith.extui %41 : i1 to i32
    %c0_i32_13 = arith.constant 0 : i32
    %43 = arith.cmpi ne, %42, %c0_i32_13 : i32
    scf.if %43 {
      %c0_14 = arith.constant 0 : index
      %44 = memref.load %arg5[%c0_14] : memref<2xf32, #tpu.memory_space<smem>>
      %c1_15 = arith.constant 1 : index
      %45 = memref.load %arg5[%c1_15] : memref<2xf32, #tpu.memory_space<smem>>
      %cst_16 = arith.constant 9.99999997E-7 : f32
      %46 = arith.addf %45, %cst_16 : f32
      %47 = arith.divf %44, %46 : f32
      %cst_17 = arith.constant 1.000000e+00 : f32
      %48 = arith.subf %cst_17, %47 : f32
      %49 = vector.broadcast %48 : f32 to vector<1x8x128xf32>
      %c0_18 = arith.constant 0 : index
      %c0_19 = arith.constant 0 : index
      %c0_20 = arith.constant 0 : index
      %50 = vector.load %arg4[%c0_18, %c0_19, %c0_20] : memref<1x8x128xf32, #tpu.memory_space<vmem>>, vector<1x8x128xf32>
      tpu.vector_store %arg4[%c0_18, %c0_19, %c0_20], %49 {strides = array<i32>} : memref<1x8x128xf32, #tpu.memory_space<vmem>>, vector<1x8x128xf32>,
    } else {
    }
    return
  }
  func.func @transform_0(%arg0: i32, %arg1: i32) -> (i32, i32, i32) {
    %c0_i32 = arith.constant 0 : i32
    %c0_i32_0 = arith.constant 0 : i32
    return %arg0, %arg1, %c0_i32 : i32, i32, i32
  }
  func.func @transform_1(%arg0: i32, %arg1: i32) -> (i32, i32, i32) {
    %c0_i32 = arith.constant 0 : i32
    %c0_i32_0 = arith.constant 0 : i32
    return %arg0, %arg1, %c0_i32 : i32, i32, i32
  }
  func.func @transform_2(%arg0: i32, %arg1: i32) -> (i32, i32, i32) {
    %c0_i32 = arith.constant 0 : i32
    %c0_i32_0 = arith.constant 0 : i32
    %c0_i32_1 = arith.constant 0 : i32
    return %arg0, %c0_i32, %c0_i32_0 : i32, i32, i32
  }
}

</mosaic_0001>

<llo_original>
// kernel: soft_iou_loss.1
$region0: #{soft_iou_loss.1}
  #allocation0 [shape = 'u32[]', space=smem, size = 0x4, offset = 0x4, fixed_abs, tag = 'smem constant byte address 0x4 - core index']
  #allocation1 [shape = 'u32[144,128]{1,0:T(1,128)}', space=vmem, size = 0x12000, scoped, tag = 'internal scratch']
  #allocation2 [shape = 'f32[2]{0:T(128)}', space=smem, size = 0x200, scoped, tag = 'scratch operand']
  %s0 = inlined_call_operand.vmem [shape: f32[4,24,128], index: 0, kind: input, shape index: {}]
  %s1 = inlined_call_operand.vmem [shape: f32[4,24,128], index: 1, kind: input, shape index: {}]
  %s2 = inlined_call_operand.vmem [shape: f32[4,8,128], index: 2, kind: output, shape index: {}]
  %s3 = sld [smem:[#allocation0]]
  $region49: #{soft_iou_loss.1} parent=0
    _
  %s5 = ssub.s32 1, %s3
  %s6 = scalar_select 0, %s5, %s3
  loop: start=0, step=1, limit=14
  $region2: #{soft_iou_loss.1} parent=0 // loop_pre_header
    _
  $region3: #{soft_iou_loss.1} parent=0 // loop_header
    %s8 = sphi 0, %s12
    %p9 = scmp.ge.s32.totalorder %s8, 14
    %s15 = sphi 0, %s27
    %s16 = sphi 0, %s23
    %s17 = sphi 0, %s15
    %s18 = sphi 0, %s16
    %s19 = sphi 0, %s17
    %s20 = sphi 0, %s18
    %s32 = sphi 0, %s34
    %s35 = sphi 0, %s32
    %s36 = sphi 0, %s35
    %s52 = sphi 0, %s36
    %s60 = sphi 0, %s62
    %s63 = sphi 0, %s60
    %s64 = sphi 0, %s63
    %s80 = sphi 0, %s64
    %s86 = sphi 0, %s88
    %s89 = sphi 0, %s86
    %s90 = sphi 0, %s89
    %s106 = sphi 0, %s90
  $region4: #{soft_iou_loss.1} parent=0 // loop_header_branch
    %11 = sbr.rel (%p9) target = $region8
  $region5: #{soft_iou_loss.1} parent=0 // loop_body
    %s13 = ssub.s32 %s8, 1
    %s14 = ssub.s32 %s8, 2
    %s21 = sadd.s32 1, %s16
    %p22 = scmp.ge.s32.totalorder %s21, 3
    %s23 = scalar_select %p22, 0, %s21
    %s24 = sadd.s32 1, %s15
    %s25 = scalar_select %p22, %s24, %s15
    %p26 = scmp.ge.s32.totalorder %s25, 4
    %s27 = scalar_select %p26, 0, %s25
    %s28 = ssub.s32 %s15, %s27
    %s29 = ssub.s32 %s16, %s23
    %s30 = sor.u32 %s28, %s29
    %p31 = scmp.eq.s32.totalorder %s30, 0
    %s33 = sadd.s32 %s32, 1
    %s34 = scalar_select %p31, %s32, %s33
    %p37 = pneg %p31
    %p38 = scmp.eq.s32.totalorder %s8, 11
    %p39 = por %p37, %p38
    %p40 = scmp.ne.s32.totalorder %s32, %s35
    %p41 = scmp.eq.s32.totalorder %s8, 0
    %p42 = por %p40, %p41
    %p43 = scmp.ne.s32.totalorder %s32, %s35
    %p44 = scmp.eq.s32.totalorder %s13, 11
    %p45 = por %p43, %p44
    %p46 = scmp.ne.s32.totalorder %s35, %s36
    %p47 = scmp.eq.s32.totalorder %s13, 0
    %p48 = por %p46, %p47
    %p49 = scmp.ne.s32.totalorder %s35, %s36
    %p50 = scmp.eq.s32.totalorder %s14, 11
    %p51 = por %p49, %p50
    %p53 = scmp.ne.s32.totalorder %s36, %s52
    %p54 = scmp.eq.s32.totalorder %s14, 0
    %p55 = por %p53, %p54
    %s56 = ssub.s32 %s15, %s27
    %s57 = ssub.s32 %s16, %s23
    %s58 = sor.u32 %s56, %s57
    %p59 = scmp.eq.s32.totalorder %s58, 0
    %s61 = sadd.s32 %s60, 1
    %s62 = scalar_select %p59, %s60, %s61
    %p65 = pneg %p59
    %p66 = scmp.eq.s32.totalorder %s8, 11
    %p67 = por %p65, %p66
    %p68 = scmp.ne.s32.totalorder %s60, %s63
    %p69 = scmp.eq.s32.totalorder %s8, 0
    %p70 = por %p68, %p69
    %p71 = scmp.ne.s32.totalorder %s60, %s63
    %p72 = scmp.eq.s32.totalorder %s13, 11
    %p73 = por %p71, %p72
    %p74 = scmp.ne.s32.totalorder %s63, %s64
    %p75 = scmp.eq.s32.totalorder %s13, 0
    %p76 = por %p74, %p75
    %p77 = scmp.ne.s32.totalorder %s63, %s64
    %p78 = scmp.eq.s32.totalorder %s14, 11
    %p79 = por %p77, %p78
    %p81 = scmp.ne.s32.totalorder %s64, %s80
    %p82 = scmp.eq.s32.totalorder %s14, 0
    %p83 = por %p81, %p82
    %s84 = ssub.s32 %s15, %s27
    %p85 = scmp.eq.s32.totalorder %s84, 0
    %s87 = sadd.s32 %s86, 1
    %s88 = scalar_select %p85, %s86, %s87
    %p91 = pneg %p85
    %p92 = scmp.eq.s32.totalorder %s8, 11
    %p93 = por %p91, %p92
    %p94 = scmp.ne.s32.totalorder %s86, %s89
    %p95 = scmp.eq.s32.totalorder %s8, 0
    %p96 = por %p94, %p95
    %p97 = scmp.ne.s32.totalorder %s86, %s89
    %p98 = scmp.eq.s32.totalorder %s13, 11
    %p99 = por %p97, %p98
    %p100 = scmp.ne.s32.totalorder %s89, %s90
    %p101 = scmp.eq.s32.totalorder %s13, 0
    %p102 = por %p100, %p101
    %p103 = scmp.ne.s32.totalorder %s89, %s90
    %p104 = scmp.eq.s32.totalorder %s14, 11
    %p105 = por %p103, %p104
    %p107 = scmp.ne.s32.totalorder %s90, %s106
    %p108 = scmp.eq.s32.totalorder %s14, 0
    %p109 = por %p107, %p108
    %p110 = scmp.le.s32.totalorder 1, %s8
    %p111 = scmp.lt.s32.totalorder %s8, 13
    %p112 = pnand %p110, %p111
    %p113 = pneg %p112
    // Predicated region
    $region9: #{soft_iou_loss.1} parent=5 // pred_check
      _
    $region10: #{soft_iou_loss.1} parent=5 // pred_check_branch
      %115 = sbr.rel (%p112) target = $region12
    $region11: #{soft_iou_loss.1} parent=5 // pred_region
      %s116 = ssub.s32 %s8, 1
    $region12: #{soft_iou_loss.1} parent=5 // pred_fallthru
      _
    %p117 = scmp.lt.s32.totalorder %s8, 12
    // Predicated region
    $region13: #{soft_iou_loss.1} parent=5 // pred_check
      %p118 = pneg %p117
    $region14: #{soft_iou_loss.1} parent=5 // pred_check_branch
      %120 = sbr.rel (%p118) target = $region16
    $region15: #{soft_iou_loss.1} parent=5 // pred_region
      // Predicated region
      $region17: #{soft_iou_loss.1} parent=15 // pred_check
        %p121 = pneg %p42
      $region18: #{soft_iou_loss.1} parent=15 // pred_check_branch
        %123 = sbr.rel (%p121) target = $region20
      $region19: #{soft_iou_loss.1} parent=15 // pred_region
        %p124 = scmp.lt.s32.totalorder %s15, 3
        %s125 = scalar_select %p124, %s15, 3
        %p126 = scmp.lt.s32.totalorder %s16, 2
        %s127 = scalar_select %p126, %s16, 2
        %s128 = smul.addr %s125, 3
        %s129 = sadd.s32 %s127, %s128
        %s130 = smul.addr %s129, 8
        %s131 = scalar_lea.vmem %s0, %s130
      $region20: #{soft_iou_loss.1} parent=15 // pred_fallthru
        _
      // Predicated region
      $region21: #{soft_iou_loss.1} parent=15 // pred_check
        %p132 = pneg %p70
      $region22: #{soft_iou_loss.1} parent=15 // pred_check_branch
        %134 = sbr.rel (%p132) target = $region24
      $region23: #{soft_iou_loss.1} parent=15 // pred_region
        %p135 = scmp.lt.s32.totalorder %s15, 3
        %s136 = scalar_select %p135, %s15, 3
        %p137 = scmp.lt.s32.totalorder %s16, 2
        %s138 = scalar_select %p137, %s16, 2
        %s139 = smul.addr %s136, 3
        %s140 = sadd.s32 %s138, %s139
        %s141 = smul.addr %s140, 8
        %s142 = scalar_lea.vmem %s1, %s141
      $region24: #{soft_iou_loss.1} parent=15 // pred_fallthru
        _
    $region16: #{soft_iou_loss.1} parent=5 // pred_fallthru
      _
    %p143 = scmp.le.s32.totalorder 1, %s8
    %p144 = scmp.lt.s32.totalorder %s8, 13
    %p145 = pnand %p143, %p144
    %p146 = pneg %p145
    // Predicated region
    $region25: #{soft_iou_loss.1} parent=5 // pred_check
      _
    $region26: #{soft_iou_loss.1} parent=5 // pred_check_branch
      %148 = sbr.rel (%p145) target = $region28
    $region27: #{soft_iou_loss.1} parent=5 // pred_region
      %s149 = ssub.s32 %s8, 1
      %p150 = scmp.lt.s32.totalorder %s17, 3
      %s151 = scalar_select %p150, %s17, 3
      %p152 = scmp.lt.s32.totalorder %s18, 2
      %s153 = scalar_select %p152, %s18, 2
      %s154 = smul.addr %s151, 3
      %s155 = sadd.s32 %s153, %s154
      %s156 = smul.addr %s155, 8
      %s157 = scalar_lea.vmem %s0, %s156
      %p158 = pneg %p48
      %p159 = pneg %p45
      %p160 = scmp.lt.s32.totalorder %s17, 3
      %s161 = scalar_select %p160, %s17, 3
      %p162 = scmp.lt.s32.totalorder %s18, 2
      %s163 = scalar_select %p162, %s18, 2
      %s164 = smul.addr %s161, 3
      %s165 = sadd.s32 %s163, %s164
      %s166 = smul.addr %s165, 8
      %s167 = scalar_lea.vmem %s1, %s166
      %p168 = pneg %p76
      %p169 = pneg %p73
      %p170 = pneg %p102
      %p171 = pneg %p99
      %p172 = scmp.lt.s32.totalorder %s17, 3
      %s173 = scalar_select %p172, %s17, 3
      %s174 = smul.addr %s173, 8
      %s175 = scalar_lea.vmem %s2, %s174
      %p176 = scmp.lt.s32.totalorder %s17, 3
      %s177 = scalar_select %p176, %s17, 3
      %p178 = scmp.lt.s32.totalorder %s18, 2
      %s179 = scalar_select %p178, %s18, 2
      %s180 = smul.addr %s177, 3
      %s181 = sadd.s32 %s179, %s180
      %s182 = smul.addr %s181, 8
      %s183 = scalar_lea.vmem %s0, %s182
      %p184 = scmp.lt.s32.totalorder %s17, 3
      %s185 = scalar_select %p184, %s17, 3
      %p186 = scmp.lt.s32.totalorder %s18, 2
      %s187 = scalar_select %p186, %s18, 2
      %s188 = smul.addr %s185, 3
      %s189 = sadd.s32 %s187, %s188
      %s190 = smul.addr %s189, 8
      %s191 = scalar_lea.vmem %s1, %s190
      %p192 = scmp.lt.s32.totalorder %s17, 3
      %s193 = scalar_select %p192, %s17, 3
      %s194 = smul.addr %s193, 8
      %s195 = scalar_lea.vmem %s2, %s194
      %p196 = scmp.eq.s32.totalorder %s18, 0
      // Predicated region
      $region29: #{soft_iou_loss.1} parent=27 // pred_check
        %p197 = pneg %p196
      $region30: #{soft_iou_loss.1} parent=27 // pred_check_branch
        %199 = sbr.rel (%p197) target = $region32
      $region31: #{soft_iou_loss.1} parent=27 // pred_region
        %s200 = scalar_lea.smem [#allocation2], 0
        %201 = sst [smem:[%s200]] 0.0
        %s202 = scalar_lea.smem [#allocation2], 1
        %203 = sst [smem:[%s202]] 0.0
      $region32: #{soft_iou_loss.1} parent=27 // pred_fallthru
        _
      %v204 = vld [vmem:[%s183] sm:$0xff]
      %v205 = vld [vmem:[%s191] sm:$0xff]
      %v206 = vxor.u32 %v204, 2147483648
      %v207 = vmul.f32 %v206, 1.442695
      %v208 = vpow.pop %v207
      %v209 = vadd.f32 %v208, 1.0
      %v210 = vrcp.pop %v209
      %v211 = vmul.f32 1.0, %v210
      %v212 = vmul.f32 %v211, %v205
      %v213 = vadd.f32 %v211, %v205
      %v214 = vsub.f32 %v213, %v212
      %v215 = vlaneseq
      %v216 = vshrl.u32 %v215, 7
      %v217 = vlaneseq
      %v218 = vand.u32 %v217, 127
      %s219 = smul.u32 %s18, 1024
      %v220 = vmul.u32 %v216, 128
      %v221 = vstv %s219
      %v222 = vadd.s32 %v221, %v220
      %v223 = vadd.s32 %v222, %v218
      %vm224 = vcmp.lt.s32.totalorder %v223, 3000
      %v225 = vsel %vm224, %v212, 0.0
      %v226 = vsel %vm224, %v214, 0.0
      %s227 = sld [smem:[#allocation2]]
      %228 = vadd.xlane.f32.xlu0 %v225
      %v229 = vpop.xlane.xlu0 %228
      %v230 = vrot.slane %v229, 4
      %v231 = vadd.f32 %v229, %v230
      %v232 = vrot.slane %v231, 2
      %v233 = vadd.f32 %v231, %v232
      %v234 = vrot.slane %v233, 1
      %v235 = vadd.f32 %v233, %v234
      %s236 = vtos %v235
      %s237 = sadd.f32 %s227, %s236
      %s238 = scalar_lea.smem [#allocation2], 0
      %239 = sst [smem:[%s238]] %s237
      %s240 = sld [smem:[#allocation2 + $0x1]]
      %241 = vadd.xlane.f32.xlu0 %v226
      %v242 = vpop.xlane.xlu0 %241
      %v243 = vrot.slane %v242, 4
      %v244 = vadd.f32 %v242, %v243
      %v245 = vrot.slane %v244, 2
      %v246 = vadd.f32 %v244, %v245
      %v247 = vrot.slane %v246, 1
      %v248 = vadd.f32 %v246, %v247
      %s249 = vtos %v248
      %s250 = sadd.f32 %s240, %s249
      %s251 = scalar_lea.smem [#allocation2], 1
      %252 = sst [smem:[%s251]] %s250
      %p253 = scmp.eq.s32.totalorder %s18, 2
      // Predicated region
      $region33: #{soft_iou_loss.1} parent=27 // pred_check
        %p254 = pneg %p253
      $region34: #{soft_iou_loss.1} parent=27 // pred_check_branch
        %256 = sbr.rel (%p254) target = $region36
      $region35: #{soft_iou_loss.1} parent=27 // pred_region
        %s257 = sld [smem:[#allocation2]]
        %s258 = sld [smem:[#allocation2 + $0x1]]
        %s259 = sadd.f32 %s258, 1e-06
        %v260 = vstv %s259
        %v261 = vrcp.pop %v260
        %s262 = vtos %v261
        %s263 = smul.f32 %s257, %s262
        %s264 = ssub.f32 1.0, %s263
        %v265 = vstv %s264
        %266 = vst [vmem:[%s195] sm:$0xff] %v265
      $region36: #{soft_iou_loss.1} parent=27 // pred_fallthru
        _
      %p267 = scmp.lt.s32.totalorder %s17, 3
      %s268 = scalar_select %p267, %s17, 3
      %s269 = smul.addr %s268, 8
      %s270 = scalar_lea.vmem %s2, %s269
      // Predicated region
      $region37: #{soft_iou_loss.1} parent=27 // pred_check
        %p271 = pneg %p99
      $region38: #{soft_iou_loss.1} parent=27 // pred_check_branch
        %273 = sbr.rel (%p271) target = $region40
      $region39: #{soft_iou_loss.1} parent=27 // pred_region
        _
      $region40: #{soft_iou_loss.1} parent=27 // pred_fallthru
        _
    $region28: #{soft_iou_loss.1} parent=5 // pred_fallthru
      _
    %p274 = scmp.le.s32.totalorder 2, %s8
    // Predicated region
    $region41: #{soft_iou_loss.1} parent=5 // pred_check
      %p275 = pneg %p274
    $region42: #{soft_iou_loss.1} parent=5 // pred_check_branch
      %277 = sbr.rel (%p275) target = $region44
    $region43: #{soft_iou_loss.1} parent=5 // pred_region
      %s278 = ssub.s32 %s8, 2
      // Predicated region
      $region45: #{soft_iou_loss.1} parent=43 // pred_check
        %p279 = pneg %p105
      $region46: #{soft_iou_loss.1} parent=43 // pred_check_branch
        %281 = sbr.rel (%p279) target = $region48
      $region47: #{soft_iou_loss.1} parent=43 // pred_region
        %p282 = scmp.lt.s32.totalorder %s19, 3
        %s283 = scalar_select %p282, %s19, 3
        %s284 = smul.addr %s283, 8
        %s285 = scalar_lea.vmem %s2, %s284
      $region48: #{soft_iou_loss.1} parent=43 // pred_fallthru
        _
    $region44: #{soft_iou_loss.1} parent=5 // pred_fallthru
      _
  $region6: #{soft_iou_loss.1} parent=0 // loop_footer
    %s12 = sadd.s32 1, %s8
  $region7: #{soft_iou_loss.1} parent=0 // loop_footer_branch
    %7 = sbr.rel target = $region3
  $region8: #{soft_iou_loss.1} parent=0 // loop_exit
    _

</llo_original>
